<compile_context>
chip_gen: v7x
topology: tpu7x:2x2x1
jax: 0.10.0
libtpu: 0.0.40
codegen_flags: <defaults>
</compile_context>

<pallas_src>
import jax
import jax.numpy as jnp
import numpy as np
from jax.experimental import pallas as pl
from jax.experimental.pallas import tpu as pltpu


def _round_up(a: int, b: int) -> int:
    return (a + b - 1) // b * b


def _vmem_capacity_bytes() -> int:
    """Per-chip VMEM capacity; conservative (v7x, 64 MiB) fallback."""
    try:
        cap = int(pltpu.get_tpu_info().vmem_capacity_bytes)
        if cap > 0:
            return cap
    except Exception:
        pass
    return 64 << 20


def _choose_tiling(m, d_model, in_itemsize, out_itemsize, vmem_cap, row_align):
    """Pick (tm, tn, vmem_limit) that fit the per-generation VMEM budget."""
    big_vmem = vmem_cap >= (100 << 20)            # v5e/v6e: 128 MiB parts
    limit = (100 << 20) if big_vmem else (48 << 20)
    tm_cap = 1024 if big_vmem else 512
    tn_cap = 1024 if big_vmem else 512            # multiples of 128

    tn = d_model if d_model <= tn_cap else tn_cap
    tm = min(_round_up(max(m, 1), row_align), tm_cap)

    def need(tm_, tn_):
        # Conservative: 2-deep buffers everywhere + Mosaic scratch headroom.
        return 2 * (tm_ * d_model * in_itemsize       # x tile
                    + d_model * tn_ * in_itemsize     # weight tile
                    + tn_ * 4                         # bias (f32)
                    + tm_ * tn_ * out_itemsize        # output tile
                    ) + (2 << 20)

    while need(tm, tn) > limit:
        can_tm = tm > row_align
        # tn may only shrink if it stays a multiple of 128 (or equals d_model).
        can_tn = tn > 128 and (tn < d_model or d_model % 128 == 0)
        if not (can_tm or can_tn):
            break
        if can_tm and (tm >= tn or not can_tn):
            tm = max(row_align, (tm // 2) // row_align * row_align or row_align)
        else:
            tn = max(128, (tn // 2) // 128 * 128 or 128)

    vmem_need = need(tm, tn)
    vmem_limit = max(min(limit, max(vmem_need, 32 << 20)), vmem_need)
    return tm, tn, int(vmem_limit)


def _linear_relu_kernel(x_ref, w_ref, b_ref, o_ref):
    # x_ref: (TM, K)   activations (f32 or bf16)
    # w_ref: (K, TN)   pre-transposed weight (same dtype as x)
    # b_ref: (1, TN)   bias, f32
    # o_ref: (TM, TN)  output, original activation dtype
    y = jnp.dot(x_ref[...], w_ref[...], preferred_element_type=jnp.float32)
    y = y + b_ref[...].astype(jnp.float32)          # f32 epilogue
    o_ref[...] = jnp.maximum(y, 0.0).astype(o_ref.dtype)


def state_space_layer(x, weight, bias, *, use_bf16=True):
    """relu(x @ weight.T + bias) via a tiled, pipelined Pallas TPU kernel.

    x:      (..., d_model)
    weight: (d_model, d_model)   PyTorch nn.Linear (out x in) layout
    bias:   (d_model,)
    use_bf16: feed the MXU bf16 inputs with f32 accumulation (default);
              set False for a strict-f32 path.
    """
    d_model = weight.shape[0]
    orig_shape = x.shape
    out_dtype = x.dtype

    x2d = x.reshape(-1, d_model)                     # (M, D)
    m = x2d.shape[0]

    # One-time parameter prep (in a real model, store W.T as the parameter):
    # canonical (M,K)x(K,N) contraction avoids any per-tile RHS relayout.
    w_t = weight.T                                   # (K, N)
    b2d = bias.reshape(1, d_model).astype(jnp.float32)

    if use_bf16:
        x2d = x2d.astype(jnp.bfloat16)
        w_t = w_t.astype(jnp.bfloat16)
    in_itemsize = np.dtype(x2d.dtype).itemsize
    out_itemsize = np.dtype(out_dtype).itemsize
    row_align = 16 if use_bf16 else 8                # bf16 packs 2 rows/sublane

    vmem_cap = _vmem_capacity_bytes()
    tm, tn, vmem_limit = _choose_tiling(
        m, d_model, in_itemsize, out_itemsize, vmem_cap, row_align)

    grid_m = pl.cdiv(m, tm)
    grid_n = pl.cdiv(d_model, tn)

    flops = 2 * m * d_model * d_model
    bytes_accessed = (grid_n * m * d_model * in_itemsize   # x streamed once per N tile
                      + d_model * d_model * in_itemsize    # weight read exactly once
                      + d_model * 4
                      + m * d_model * out_itemsize)

    def build_and_call(single_buffer_consts):
        def const_spec(block, imap):
            # Block index constant over the inner loop -> single-buffer to
            # reclaim the largest VMEM double-buffer.
            if single_buffer_consts:
                return pl.BlockSpec(block, imap, pipeline_mode=pl.Buffered(1))
            return pl.BlockSpec(block, imap)

        if grid_n == 1:
            # Whole weight fits one block; 1-D grid over tokens keeps the
            # leading "parallel" axis populated for v7x megacore.
            grid = (grid_m,)
            in_specs = [
                pl.BlockSpec((tm, d_model), lambda i: (i, 0)),          # x
                const_spec((d_model, d_model), lambda i: (0, 0)),       # W.T
                const_spec((1, d_model), lambda i: (0, 0)),             # bias
            ]
            out_specs = pl.BlockSpec((tm, d_model), lambda i: (i, 0))
            dims = ("parallel",)
        else:
            # N = slow axis, M = fast axis: weight tile resident across the
            # whole token sweep (weight read once from HBM).
            grid = (grid_n, grid_m)
            in_specs = [
                pl.BlockSpec((tm, d_model), lambda i, j: (j, 0)),       # x
                const_spec((d_model, tn), lambda i, j: (0, i)),         # W.T tile
                const_spec((1, tn), lambda i, j: (0, i)),               # bias tile
            ]
            out_specs = pl.BlockSpec((tm, tn), lambda i, j: (j, i))
            dims = ("parallel", "parallel")

        return pl.pallas_call(
            _linear_relu_kernel,
            out_shape=jax.ShapeDtypeStruct((m, d_model), out_dtype),
            grid_spec=pl.GridSpec(grid=grid, in_specs=in_specs, out_specs=out_specs),
            compiler_params=pltpu.CompilerParams(
                dimension_semantics=dims,
                vmem_limit_bytes=vmem_limit),
            cost_estimate=pl.CostEstimate(
                flops=flops, transcendentals=0, bytes_accessed=int(bytes_accessed)),
        )(x2d, w_t, b2d)

    try:
        out = build_and_call(single_buffer_consts=True)
        out = jax.block_until_ready(out)
    except Exception:
        # Fall back to default double-buffering if Buffered(1) is rejected.
        out = build_and_call(single_buffer_consts=False)

    return out.reshape(orig_shape)


if __name__ == "__main__":
    d_model = 32
    batch, seq = 2, 8

    key = jax.random.PRNGKey(0)
    kx, kw, kb = jax.random.split(key, 3)

    # Deterministic init mimicking nn.Linear's uniform(-1/sqrt(D), 1/sqrt(D)).
    bound = 1.0 / (d_model ** 0.5)
    weight = jax.random.uniform(kw, (d_model, d_model), jnp.float32, -bound, bound)
    bias = jax.random.uniform(kb, (d_model,), jnp.float32, -bound, bound)
    x = jax.random.normal(kx, (batch, seq, d_model), jnp.float32)

    ref = jnp.maximum(x @ weight.T + bias, 0.0)

    # Strict f32 path: tight tolerance.
    y_f32 = jax.block_until_ready(state_space_layer(x, weight, bias, use_bf16=False))
    assert y_f32.shape == x.shape
    assert jnp.allclose(y_f32, ref, atol=1e-5, rtol=1e-5), "f32 path mismatch vs reference"

    # Default bf16-input / f32-accumulate path: error bounded by input rounding.
    y_bf16 = jax.block_until_ready(state_space_layer(x, weight, bias, use_bf16=True))
    assert y_bf16.shape == x.shape
    assert jnp.allclose(y_bf16, ref, atol=5e-2, rtol=5e-2), "bf16 path mismatch vs reference"

    print("KERNEL_OK")
</pallas_src>

<mosaic_0001>
module attributes {stable_mosaic.version = 11 : i64} {
  func.func @_linear_relu_kernel(%arg0: i32, %arg1: memref<16x32xf32, #tpu.memory_space<vmem>>, %arg2: memref<32x32xf32, #tpu.memory_space<vmem>>, %arg3: memref<1x32xf32, #tpu.memory_space<vmem>>, %arg4: memref<16x32xf32, #tpu.memory_space<vmem>>) attributes {dimension_semantics = [#tpu.dimension_semantics<parallel>], iteration_bounds = array<i64: 1>, scalar_prefetch = 0 : i64, scratch_operands = 0 : i64, tpu.core_type = #tpu.core_type<tc>, window_params = [{transform_indices = @transform_0, window_bounds = array<i64: 16, 32>}, {pipeline_mode = #tpu.pipeline_mode<synchronous>, transform_indices = @transform_1, window_bounds = array<i64: 32, 32>}, {pipeline_mode = #tpu.pipeline_mode<synchronous>, transform_indices = @transform_2, window_bounds = array<i64: 1, 32>}, {transform_indices = @transform_3, window_bounds = array<i64: 16, 32>}]} {
    %c0 = arith.constant 0 : index
    %c0_0 = arith.constant 0 : index
    %0 = vector.load %arg1[%c0, %c0_0] : memref<16x32xf32, #tpu.memory_space<vmem>>, vector<16x32xf32>
    %c0_1 = arith.constant 0 : index
    %c0_2 = arith.constant 0 : index
    %1 = vector.load %arg2[%c0_1, %c0_2] : memref<32x32xf32, #tpu.memory_space<vmem>>, vector<32x32xf32>
    %cst = arith.constant dense<0.000000e+00> : vector<16x32xf32>
    %2 = tpu.matmul %0, %1, %cst {dimension_numbers = #tpu.dot_dimension_numbers<[1], [0], [0], [1], [0, 0, 1, 1], [], []>} : vector<16x32xf32>, vector<32x32xf32>, vector<16x32xf32> -> vector<16x32xf32>
    %c0_3 = arith.constant 0 : index
    %c0_4 = arith.constant 0 : index
    %3 = vector.load %arg3[%c0_3, %c0_4] : memref<1x32xf32, #tpu.memory_space<vmem>>, vector<1x32xf32>
    %4 = vector.broadcast %3 : vector<1x32xf32> to vector<16x32xf32>
    %5 = arith.addf %2, %4 : vector<16x32xf32>
    %cst_5 = arith.constant 0.000000e+00 : f32
    %6 = vector.broadcast %cst_5 : f32 to vector<16x32xf32>
    %7 = arith.maximumf %5, %6 : vector<16x32xf32>
    %c0_6 = arith.constant 0 : index
    %c0_7 = arith.constant 0 : index
    %8 = vector.load %arg4[%c0_6, %c0_7] : memref<16x32xf32, #tpu.memory_space<vmem>>, vector<16x32xf32>
    tpu.vector_store %arg4[%c0_6, %c0_7], %7 {strides = array<i32>} : memref<16x32xf32, #tpu.memory_space<vmem>>, vector<16x32xf32>,
    return
  }
  func.func @transform_0(%arg0: i32) -> (i32, i32) {
    %c0_i32 = arith.constant 0 : i32
    %c0_i32_0 = arith.constant 0 : i32
    return %arg0, %c0_i32 : i32, i32
  }
  func.func @transform_1(%arg0: i32) -> (i32, i32) {
    %c0_i32 = arith.constant 0 : i32
    %c0_i32_0 = arith.constant 0 : i32
    %c0_i32_1 = arith.constant 0 : i32
    return %c0_i32, %c0_i32_0 : i32, i32
  }
  func.func @transform_2(%arg0: i32) -> (i32, i32) {
    %c0_i32 = arith.constant 0 : i32
    %c0_i32_0 = arith.constant 0 : i32
    %c0_i32_1 = arith.constant 0 : i32
    return %c0_i32, %c0_i32_0 : i32, i32
  }
  func.func @transform_3(%arg0: i32) -> (i32, i32) {
    %c0_i32 = arith.constant 0 : i32
    %c0_i32_0 = arith.constant 0 : i32
    return %arg0, %c0_i32 : i32, i32
  }
}

module attributes {stable_mosaic.version = 11 : i64} {
  func.func @_linear_relu_kernel(%arg0: i32, %arg1: memref<16x32xf32, #tpu.memory_space<vmem>>, %arg2: memref<32x32xf32, #tpu.memory_space<vmem>>, %arg3: memref<1x32xf32, #tpu.memory_space<vmem>>, %arg4: memref<16x32xf32, #tpu.memory_space<vmem>>) attributes {dimension_semantics = [#tpu.dimension_semantics<parallel>], iteration_bounds = array<i64: 1>, scalar_prefetch = 0 : i64, scratch_operands = 0 : i64, tpu.core_type = #tpu.core_type<tc>, window_params = [{transform_indices = @transform_0, window_bounds = array<i64: 16, 32>}, {pipeline_mode = #tpu.pipeline_mode<synchronous>, transform_indices = @transform_1, window_bounds = array<i64: 32, 32>}, {pipeline_mode = #tpu.pipeline_mode<synchronous>, transform_indices = @transform_2, window_bounds = array<i64: 1, 32>}, {transform_indices = @transform_3, window_bounds = array<i64: 16, 32>}]} {
    %c0 = arith.constant 0 : index
    %c0_0 = arith.constant 0 : index
    %0 = vector.load %arg1[%c0, %c0_0] : memref<16x32xf32, #tpu.memory_space<vmem>>, vector<16x32xf32>
    %c0_1 = arith.constant 0 : index
    %c0_2 = arith.constant 0 : index
    %1 = vector.load %arg2[%c0_1, %c0_2] : memref<32x32xf32, #tpu.memory_space<vmem>>, vector<32x32xf32>
    %cst = arith.constant dense<0.000000e+00> : vector<16x32xf32>
    %2 = tpu.matmul %0, %1, %cst {dimension_numbers = #tpu.dot_dimension_numbers<[1], [0], [0], [1], [0, 0, 1, 1], [], []>} : vector<16x32xf32>, vector<32x32xf32>, vector<16x32xf32> -> vector<16x32xf32>
    %c0_3 = arith.constant 0 : index
    %c0_4 = arith.constant 0 : index
    %3 = vector.load %arg3[%c0_3, %c0_4] : memref<1x32xf32, #tpu.memory_space<vmem>>, vector<1x32xf32>
    %4 = vector.broadcast %3 : vector<1x32xf32> to vector<16x32xf32>
    %5 = arith.addf %2, %4 : vector<16x32xf32>
    %cst_5 = arith.constant 0.000000e+00 : f32
    %6 = vector.broadcast %cst_5 : f32 to vector<16x32xf32>
    %7 = arith.maximumf %5, %6 : vector<16x32xf32>
    %c0_6 = arith.constant 0 : index
    %c0_7 = arith.constant 0 : index
    %8 = vector.load %arg4[%c0_6, %c0_7] : memref<16x32xf32, #tpu.memory_space<vmem>>, vector<16x32xf32>
    tpu.vector_store %arg4[%c0_6, %c0_7], %7 {strides = array<i32>} : memref<16x32xf32, #tpu.memory_space<vmem>>, vector<16x32xf32>,
    return
  }
  func.func @transform_0(%arg0: i32) -> (i32, i32) {
    %c0_i32 = arith.constant 0 : i32
    %c0_i32_0 = arith.constant 0 : i32
    return %arg0, %c0_i32 : i32, i32
  }
  func.func @transform_1(%arg0: i32) -> (i32, i32) {
    %c0_i32 = arith.constant 0 : i32
    %c0_i32_0 = arith.constant 0 : i32
    %c0_i32_1 = arith.constant 0 : i32
    return %c0_i32, %c0_i32_0 : i32, i32
  }
  func.func @transform_2(%arg0: i32) -> (i32, i32) {
    %c0_i32 = arith.constant 0 : i32
    %c0_i32_0 = arith.constant 0 : i32
    %c0_i32_1 = arith.constant 0 : i32
    return %c0_i32, %c0_i32_0 : i32, i32
  }
  func.func @transform_3(%arg0: i32) -> (i32, i32) {
    %c0_i32 = arith.constant 0 : i32
    %c0_i32_0 = arith.constant 0 : i32
    return %arg0, %c0_i32 : i32, i32
  }
}

</mosaic_0001>

<llo_original>
// kernel: tpu_custom_call.1
$region0: #{tpu_custom_call.1}
  #allocation0 [shape = 'u32[]', space=smem, size = 0x4, offset = 0x4, fixed_abs, tag = 'smem constant byte address 0x4 - core index']
  #allocation1 [shape = 'u32[144,128]{1,0:T(1,128)}', space=vmem, size = 0x12000, scoped, tag = 'internal scratch']
  %s0 = inlined_call_operand.hbm [shape: f32[16,32], index: 0, kind: input, shape index: {}]
  %s1 = inlined_call_operand.hbm [shape: f32[32,32], index: 1, kind: input, shape index: {}]
  %s2 = inlined_call_operand.vmem [shape: f32[1,32], index: 2, kind: input, shape index: {}]
  %s3 = inlined_call_operand.hbm [shape: f32[16,32], index: 3, kind: output, shape index: {}]
  %s4 = sld [smem:[#allocation0]]
  $region30: #{tpu_custom_call.1} parent=0
    _
  %s6 = ssub.s32 1, %s4
  %s7 = scalar_select 0, %s6, %s4
  $region1: #{tpu_custom_call.1} parent=0
    #allocation2 [shape = 'u8[8192]{0}', space=vmem, size = 0x2000, scoped, tag = 'input window, operand 0, single buffered']
    #allocation3 [shape = 's32[1]{0}', space=sflag, size = 0x4, scoped, tag = 'scoped memory for tpu_custom_call.1']
    #allocation4 [shape = 's32[1]{0}', space=sflag, size = 0x4, scoped, tag = 'scoped memory for tpu_custom_call.1']
    #allocation5 [shape = 'u8[16384]{0}', space=vmem, size = 0x4000, scoped, tag = 'input window, operand 1, single buffered']
    #allocation6 [shape = 's32[1]{0}', space=sflag, size = 0x4, scoped, tag = 'scoped memory for tpu_custom_call.1']
    #allocation7 [shape = 'u8[8192]{0}', space=vmem, size = 0x2000, scoped, tag = 'output window, operand 0, single buffered']
    %8 = vsyncpa [#allocation3], 0
    %9 = vsyncpa [#allocation6], 0
    %10 = vsyncpa [#allocation4], 0
    // Predicated region
    $region2: #{tpu_custom_call.1} parent=1 // pred_check
      _
    $region3: #{tpu_custom_call.1} parent=1 // pred_check_branch
      %12 = sbr.rel (0) target = $region5
    $region4: #{tpu_custom_call.1} parent=1 // pred_region
      %s14 = ssub.s32 256, 256
      %15 = vsyncadd [#allocation3], %s14
      %s16 = sshll.u32 [#allocation2], 4
      %s17 = int_to_ptr.vmem [resolvable:$true] %s16
      %22 = dma.hbm_to_vmem [thread:$0]  %s0, 256, %s17, [#allocation3], 128, 128, 8
    $region5: #{tpu_custom_call.1} parent=1 // pred_fallthru
      _
    // Predicated region
    $region6: #{tpu_custom_call.1} parent=1 // pred_check
      _
    $region7: #{tpu_custom_call.1} parent=1 // pred_check_branch
      %24 = sbr.rel (0) target = $region9
    $region8: #{tpu_custom_call.1} parent=1 // pred_region
      %s26 = ssub.s32 512, 512
      %27 = vsyncadd [#allocation6], %s26
      %s28 = sshll.u32 [#allocation5], 4
      %s29 = int_to_ptr.vmem [resolvable:$true] %s28
      %34 = dma.hbm_to_vmem [thread:$0]  %s1, 512, %s29, [#allocation6], 128, 128, 8
    $region9: #{tpu_custom_call.1} parent=1 // pred_fallthru
      _
    // Predicated region
    $region10: #{tpu_custom_call.1} parent=1 // pred_check
      _
    $region11: #{tpu_custom_call.1} parent=1 // pred_check_branch
      %36 = sbr.rel (0) target = $region13
    $region12: #{tpu_custom_call.1} parent=1 // pred_region
      _
    $region13: #{tpu_custom_call.1} parent=1 // pred_fallthru
      _
    // Predicated region
    $region14: #{tpu_custom_call.1} parent=1 // pred_check
      _
    $region15: #{tpu_custom_call.1} parent=1 // pred_check_branch
      %38 = sbr.rel (0) target = $region17
    $region16: #{tpu_custom_call.1} parent=1 // pred_region
      %39 = dma.done [#allocation3], 256
    $region17: #{tpu_custom_call.1} parent=1 // pred_fallthru
      _
    // Predicated region
    $region18: #{tpu_custom_call.1} parent=1 // pred_check
      _
    $region19: #{tpu_custom_call.1} parent=1 // pred_check_branch
      %41 = sbr.rel (0) target = $region21
    $region20: #{tpu_custom_call.1} parent=1 // pred_region
      %42 = dma.done [#allocation6], 512
    $region21: #{tpu_custom_call.1} parent=1 // pred_fallthru
      _
    %v43 = vld [vmem:[#allocation2] sm:$0xff]
    %v44 = vld [vmem:[#allocation2 + $0x8] sm:$0xff]
    %v45 = vld [vmem:[#allocation5] sm:$0xff]
    %v46 = vld [vmem:[#allocation5 + $0x8] sm:$0xff]
    %v47 = vld [vmem:[#allocation5 + $0x10] sm:$0xff]
    %v48 = vld [vmem:[#allocation5 + $0x18] sm:$0xff]
    %v49 = vld [vmem:[%s2] sm:$0x1]
    %v51 = vlaneseq
    %v52 = vshrl.u32 %v51, 7
    %v53 = vsub.s32 0, %v52
    %v54 = vrot.slane %v49, %v53
    %vm56 = vcmask 261120
    %v58 = vsel %vm56, %v43, 0
    %v61 = vsel %vm56, %v44, 0
    %63 = vmatprep.subr.mxu0 0.0
    %64 = vmatpush1.msra.mxu0 %v45
    %65 = vmatprep.subr.mxu0 0.0
    %66 = vmatpush1.msra.mxu0 %v46
    %67 = vmatprep.subr.mxu0 0.0
    %68 = vmatpush1.msra.mxu0 %v47
    %69 = vmatprep.subr.mxu0 0.0
    %70 = vmatpush1.msra.mxu0 %v48
    %71 = vmatprep.subr.mxu0 0.0
    %72 = vmatpush1.msra.mxu0 0.0
    %73 = vmatprep.subr.mxu0 0.0
    %74 = vmatpush1.msra.mxu0 0.0
    %75 = vmatprep.subr.mxu0 0.0
    %76 = vmatpush1.msra.mxu0 0.0
    %77 = vmatprep.subr.mxu0 0.0
    %78 = vmatpush1.msra.mxu0 0.0
    %79 = vmatprep.subr.mxu0 0.0
    %80 = vmatpush1.msra.mxu0 0.0
    %81 = vmatprep.subr.mxu0 0.0
    %82 = vmatpush1.msra.mxu0 0.0
    %83 = vmatprep.subr.mxu0 0.0
    %84 = vmatpush1.msra.mxu0 0.0
    %85 = vmatprep.subr.mxu0 0.0
    %86 = vmatpush1.msra.mxu0 0.0
    %87 = vmatprep.subr.mxu0 0.0
    %88 = vmatpush1.msra.mxu0 0.0
    %89 = vmatprep.subr.mxu0 0.0
    %90 = vmatpush1.msra.mxu0 0.0
    %91 = vmatprep.subr.mxu0 0.0
    %92 = vmatpush1.msra.mxu0 0.0
    %93 = vmatprep.subr.mxu0 0.0
    %94 = vmatpush1.msra.mxu0 0.0
    %95 = vmatprep.subr.mxu0 0.0
    %96 = vmatpush1.msra.mxu0 0.0
    %97 = vmatprep.subr.mxu0 0.0
    %98 = vmatpush1.msra.mxu0 0.0
    %99 = vmatprep.subr.mxu0 0.0
    %100 = vmatpush1.msra.mxu0 0.0
    %101 = vmatprep.subr.mxu0 0.0
    %102 = vmatpush1.msra.mxu0 0.0
    %103 = vmatprep.subr.mxu0 0.0
    %104 = vmatpush1.msra.mxu0 0.0
    %105 = vmatprep.subr.mxu0 0.0
    %106 = vmatpush1.msra.mxu0 0.0
    %107 = vmatprep.subr.mxu0 0.0
    %108 = vmatpush1.msra.mxu0 0.0
    %109 = vmatprep.subr.mxu0 0.0
    %110 = vmatpush1.msra.mxu0 0.0
    %111 = vmatprep.subr.mxu0 0.0
    %112 = vmatpush1.msra.mxu0 0.0
    %113 = vmatprep.subr.mxu0 0.0
    %114 = vmatpush1.msra.mxu0 0.0
    %115 = vmatprep.subr.mxu0 0.0
    %116 = vmatpush1.msra.mxu0 0.0
    %117 = vmatprep.subr.mxu0 0.0
    %118 = vmatpush1.msra.mxu0 0.0
    %119 = vmatprep.subr.mxu0 0.0
    %120 = vmatpush1.msra.mxu0 0.0
    %121 = vmatprep.subr.mxu0 0.0
    %122 = vmatpush1.msra.mxu0 0.0
    %123 = vmatprep.subr.mxu0 0.0
    %124 = vmatpush1.msra.mxu0 0.0
    %125 = vmatprep.subr.mxu0 0.0
    %126 = vmatpush1.msra.mxu0 0.0
    %127 = vmatprep.mubr.f32.mxu0 0.0
    %128 = vmatmul.mubr.f32.gmra.mrb[0].mxu0 %v58
    %v129 = vpop.f32.mrb[0].mxu0
    %v130 = vadd.f32 %v54, %v129
    %v131 = vpop.f32.mrb[0].mxu0
    %132 = vmatprep.mubr.f32.mxu0 0.0
    %133 = vmatmul.mubr.f32.gmra.mrb[0].mxu0 %v61
    %v134 = vpop.f32.mrb[0].mxu0
    %v135 = vadd.f32 %v54, %v134
    %v136 = vpop.f32.mrb[0].mxu0
    %137 = vdwg.mxu0
    %v138 = vmax.f32 %v130, 0.0
    %v139 = vmax.f32 %v135, 0.0
    %140 = vst.msk [vmem:[#allocation7] sm:$0xff] %vm56, %v138
    %141 = vst.msk [vmem:[#allocation7 + $0x8] sm:$0xff] %vm56, %v139
    // Predicated region
    $region22: #{tpu_custom_call.1} parent=1 // pred_check
      _
    $region23: #{tpu_custom_call.1} parent=1 // pred_check_branch
      %143 = sbr.rel (0) target = $region25
    $region24: #{tpu_custom_call.1} parent=1 // pred_region
      %s145 = ssub.s32 256, 256
      %146 = vsyncadd [#allocation4], %s145
      %s147 = sshll.u32 [#allocation7], 4
      %s148 = int_to_ptr.vmem [resolvable:$true] %s147
      %153 = dma.vmem_to_hbm [thread:$0]  %s148, 256, %s3, [#allocation4], 128, 128, 8
    $region25: #{tpu_custom_call.1} parent=1 // pred_fallthru
      _
    // Predicated region
    $region26: #{tpu_custom_call.1} parent=1 // pred_check
      _
    $region27: #{tpu_custom_call.1} parent=1 // pred_check_branch
      %155 = sbr.rel (0) target = $region29
    $region28: #{tpu_custom_call.1} parent=1 // pred_region
      %156 = dma.done [#allocation4], 256
    $region29: #{tpu_custom_call.1} parent=1 // pred_fallthru
      _
    %157 = vsyncpa [#allocation3], 1
    %158 = vsyncpa [#allocation6], 1
    %159 = vsyncpa [#allocation4], 1

// kernel: tpu_custom_call.1
$region0: #{tpu_custom_call.1}
  #allocation0 [shape = 'u32[]', space=smem, size = 0x4, offset = 0x4, fixed_abs, tag = 'smem constant byte address 0x4 - core index']
  #allocation1 [shape = 'u32[144,128]{1,0:T(1,128)}', space=vmem, size = 0x12000, scoped, tag = 'internal scratch']
  %s0 = inlined_call_operand.hbm [shape: f32[16,32], index: 0, kind: input, shape index: {}]
  %s1 = inlined_call_operand.hbm [shape: f32[32,32], index: 1, kind: input, shape index: {}]
  %s2 = inlined_call_operand.vmem [shape: f32[1,32], index: 2, kind: input, shape index: {}]
  %s3 = inlined_call_operand.hbm [shape: f32[16,32], index: 3, kind: output, shape index: {}]
  %s4 = sld [smem:[#allocation0]]
  $region30: #{tpu_custom_call.1} parent=0
    _
  %s6 = ssub.s32 1, %s4
  %s7 = scalar_select 0, %s6, %s4
  $region1: #{tpu_custom_call.1} parent=0
    #allocation2 [shape = 'u8[8192]{0}', space=vmem, size = 0x2000, scoped, tag = 'input window, operand 0, single buffered']
    #allocation3 [shape = 's32[1]{0}', space=sflag, size = 0x4, scoped, tag = 'scoped memory for tpu_custom_call.1']
    #allocation4 [shape = 's32[1]{0}', space=sflag, size = 0x4, scoped, tag = 'scoped memory for tpu_custom_call.1']
    #allocation5 [shape = 'u8[16384]{0}', space=vmem, size = 0x4000, scoped, tag = 'input window, operand 1, single buffered']
    #allocation6 [shape = 's32[1]{0}', space=sflag, size = 0x4, scoped, tag = 'scoped memory for tpu_custom_call.1']
    #allocation7 [shape = 'u8[8192]{0}', space=vmem, size = 0x2000, scoped, tag = 'output window, operand 0, single buffered']
    %8 = vsyncpa [#allocation3], 0
    %9 = vsyncpa [#allocation6], 0
    %10 = vsyncpa [#allocation4], 0
    // Predicated region
    $region2: #{tpu_custom_call.1} parent=1 // pred_check
      _
    $region3: #{tpu_custom_call.1} parent=1 // pred_check_branch
      %12 = sbr.rel (0) target = $region5
    $region4: #{tpu_custom_call.1} parent=1 // pred_region
      %s14 = ssub.s32 256, 256
      %15 = vsyncadd [#allocation3], %s14
      %s16 = sshll.u32 [#allocation2], 4
      %s17 = int_to_ptr.vmem [resolvable:$true] %s16
      %22 = dma.hbm_to_vmem [thread:$0]  %s0, 256, %s17, [#allocation3], 128, 128, 8
    $region5: #{tpu_custom_call.1} parent=1 // pred_fallthru
      _
    // Predicated region
    $region6: #{tpu_custom_call.1} parent=1 // pred_check
      _
    $region7: #{tpu_custom_call.1} parent=1 // pred_check_branch
      %24 = sbr.rel (0) target = $region9
    $region8: #{tpu_custom_call.1} parent=1 // pred_region
      %s26 = ssub.s32 512, 512
      %27 = vsyncadd [#allocation6], %s26
      %s28 = sshll.u32 [#allocation5], 4
      %s29 = int_to_ptr.vmem [resolvable:$true] %s28
      %34 = dma.hbm_to_vmem [thread:$0]  %s1, 512, %s29, [#allocation6], 128, 128, 8
    $region9: #{tpu_custom_call.1} parent=1 // pred_fallthru
      _
    // Predicated region
    $region10: #{tpu_custom_call.1} parent=1 // pred_check
      _
    $region11: #{tpu_custom_call.1} parent=1 // pred_check_branch
      %36 = sbr.rel (0) target = $region13
    $region12: #{tpu_custom_call.1} parent=1 // pred_region
      _
    $region13: #{tpu_custom_call.1} parent=1 // pred_fallthru
      _
    // Predicated region
    $region14: #{tpu_custom_call.1} parent=1 // pred_check
      _
    $region15: #{tpu_custom_call.1} parent=1 // pred_check_branch
      %38 = sbr.rel (0) target = $region17
    $region16: #{tpu_custom_call.1} parent=1 // pred_region
      %39 = dma.done [#allocation3], 256
    $region17: #{tpu_custom_call.1} parent=1 // pred_fallthru
      _
    // Predicated region
    $region18: #{tpu_custom_call.1} parent=1 // pred_check
      _
    $region19: #{tpu_custom_call.1} parent=1 // pred_check_branch
      %41 = sbr.rel (0) target = $region21
    $region20: #{tpu_custom_call.1} parent=1 // pred_region
      %42 = dma.done [#allocation6], 512
    $region21: #{tpu_custom_call.1} parent=1 // pred_fallthru
      _
    %v43 = vld [vmem:[#allocation2] sm:$0xff]
    %v44 = vld [vmem:[#allocation2 + $0x8] sm:$0xff]
    %v45 = vld [vmem:[#allocation5] sm:$0xff]
    %v46 = vld [vmem:[#allocation5 + $0x8] sm:$0xff]
    %v47 = vld [vmem:[#allocation5 + $0x10] sm:$0xff]
    %v48 = vld [vmem:[#allocation5 + $0x18] sm:$0xff]
    %v49 = vld [vmem:[%s2] sm:$0x1]
    %v51 = vlaneseq
    %v52 = vshrl.u32 %v51, 7
    %v53 = vsub.s32 0, %v52
    %v54 = vrot.slane %v49, %v53
    %vm56 = vcmask 261120
    %v58 = vsel %vm56, %v43, 0
    %v61 = vsel %vm56, %v44, 0
    %63 = vmatprep.subr.mxu0 0.0
    %64 = vmatpush1.msra.mxu0 %v45
    %65 = vmatprep.subr.mxu0 0.0
    %66 = vmatpush1.msra.mxu0 %v46
    %67 = vmatprep.subr.mxu0 0.0
    %68 = vmatpush1.msra.mxu0 %v47
    %69 = vmatprep.subr.mxu0 0.0
    %70 = vmatpush1.msra.mxu0 %v48
    %71 = vmatprep.subr.mxu0 0.0
    %72 = vmatpush1.msra.mxu0 0.0
    %73 = vmatprep.subr.mxu0 0.0
    %74 = vmatpush1.msra.mxu0 0.0
    %75 = vmatprep.subr.mxu0 0.0
    %76 = vmatpush1.msra.mxu0 0.0
    %77 = vmatprep.subr.mxu0 0.0
    %78 = vmatpush1.msra.mxu0 0.0
    %79 = vmatprep.subr.mxu0 0.0
    %80 = vmatpush1.msra.mxu0 0.0
    %81 = vmatprep.subr.mxu0 0.0
    %82 = vmatpush1.msra.mxu0 0.0
    %83 = vmatprep.subr.mxu0 0.0
    %84 = vmatpush1.msra.mxu0 0.0
    %85 = vmatprep.subr.mxu0 0.0
    %86 = vmatpush1.msra.mxu0 0.0
    %87 = vmatprep.subr.mxu0 0.0
    %88 = vmatpush1.msra.mxu0 0.0
    %89 = vmatprep.subr.mxu0 0.0
    %90 = vmatpush1.msra.mxu0 0.0
    %91 = vmatprep.subr.mxu0 0.0
    %92 = vmatpush1.msra.mxu0 0.0
    %93 = vmatprep.subr.mxu0 0.0
    %94 = vmatpush1.msra.mxu0 0.0
    %95 = vmatprep.subr.mxu0 0.0
    %96 = vmatpush1.msra.mxu0 0.0
    %97 = vmatprep.subr.mxu0 0.0
    %98 = vmatpush1.msra.mxu0 0.0
    %99 = vmatprep.subr.mxu0 0.0
    %100 = vmatpush1.msra.mxu0 0.0
    %101 = vmatprep.subr.mxu0 0.0
    %102 = vmatpush1.msra.mxu0 0.0
    %103 = vmatprep.subr.mxu0 0.0
    %104 = vmatpush1.msra.mxu0 0.0
    %105 = vmatprep.subr.mxu0 0.0
    %106 = vmatpush1.msra.mxu0 0.0
    %107 = vmatprep.subr.mxu0 0.0
    %108 = vmatpush1.msra.mxu0 0.0
    %109 = vmatprep.subr.mxu0 0.0
    %110 = vmatpush1.msra.mxu0 0.0
    %111 = vmatprep.subr.mxu0 0.0
    %112 = vmatpush1.msra.mxu0 0.0
    %113 = vmatprep.subr.mxu0 0.0
    %114 = vmatpush1.msra.mxu0 0.0
    %115 = vmatprep.subr.mxu0 0.0
    %116 = vmatpush1.msra.mxu0 0.0
    %117 = vmatprep.subr.mxu0 0.0
    %118 = vmatpush1.msra.mxu0 0.0
    %119 = vmatprep.subr.mxu0 0.0
    %120 = vmatpush1.msra.mxu0 0.0
    %121 = vmatprep.subr.mxu0 0.0
    %122 = vmatpush1.msra.mxu0 0.0
    %123 = vmatprep.subr.mxu0 0.0
    %124 = vmatpush1.msra.mxu0 0.0
    %125 = vmatprep.subr.mxu0 0.0
    %126 = vmatpush1.msra.mxu0 0.0
    %127 = vmatprep.mubr.f32.mxu0 0.0
    %128 = vmatmul.mubr.f32.gmra.mrb[0].mxu0 %v58
    %v129 = vpop.f32.mrb[0].mxu0
    %v130 = vadd.f32 %v54, %v129
    %v131 = vpop.f32.mrb[0].mxu0
    %132 = vmatprep.mubr.f32.mxu0 0.0
    %133 = vmatmul.mubr.f32.gmra.mrb[0].mxu0 %v61
    %v134 = vpop.f32.mrb[0].mxu0
    %v135 = vadd.f32 %v54, %v134
    %v136 = vpop.f32.mrb[0].mxu0
    %137 = vdwg.mxu0
    %v138 = vmax.f32 %v130, 0.0
    %v139 = vmax.f32 %v135, 0.0
    %140 = vst.msk [vmem:[#allocation7] sm:$0xff] %vm56, %v138
    %141 = vst.msk [vmem:[#allocation7 + $0x8] sm:$0xff] %vm56, %v139
    // Predicated region
    $region22: #{tpu_custom_call.1} parent=1 // pred_check
      _
    $region23: #{tpu_custom_call.1} parent=1 // pred_check_branch
      %143 = sbr.rel (0) target = $region25
    $region24: #{tpu_custom_call.1} parent=1 // pred_region
      %s145 = ssub.s32 256, 256
      %146 = vsyncadd [#allocation4], %s145
      %s147 = sshll.u32 [#allocation7], 4
      %s148 = int_to_ptr.vmem [resolvable:$true] %s147
      %153 = dma.vmem_to_hbm [thread:$0]  %s148, 256, %s3, [#allocation4], 128, 128, 8
    $region25: #{tpu_custom_call.1} parent=1 // pred_fallthru
      _
    // Predicated region
    $region26: #{tpu_custom_call.1} parent=1 // pred_check
      _
    $region27: #{tpu_custom_call.1} parent=1 // pred_check_branch
      %155 = sbr.rel (0) target = $region29
    $region28: #{tpu_custom_call.1} parent=1 // pred_region
      %156 = dma.done [#allocation4], 256
    $region29: #{tpu_custom_call.1} parent=1 // pred_fallthru
      _
    %157 = vsyncpa [#allocation3], 1
    %158 = vsyncpa [#allocation6], 1
    %159 = vsyncpa [#allocation4], 1

</llo_original>
